<compile_context>
chip_gen: v5e
topology: v5e:2x2
jax: 0.10.0
libtpu: 0.0.40
codegen_flags: <defaults>
</compile_context>

<pallas_src>
import jax
import jax.numpy as jnp
from jax import lax
from jax.experimental import pallas as pl
from jax.experimental.pallas import tpu as pltpu

LIF_THRESHOLD = 1.0           # voltage threshold for the single-step spike nonlinearity

_SUBLANE = 8                  # f32 sublane tile
_LANE = 128                   # lane width (small feature dims pad to this in VMEM)
_DEFAULT_MAX_BATCH_TILE = 8192
_VMEM_TILE_BUDGET = 28 << 20  # target kernel VMEM working set (fits v7x's 64 MiB with headroom)
_VMEM_LIMIT_CAP = 40 << 20    # scoped-VMEM limit handed to Mosaic (raises v5e's 16 MiB default)
_MEGACORE_SPLIT_ROWS = 2048   # once each half-tile still moves >~1 MiB, prefer >=2 grid steps


def _round_up(x, m):
    return (x + m - 1) // m * m


def _cdiv(a, b):
    return (a + b - 1) // b


def _vmem_bytes_per_batch_row(d_in, hidden, d_out):
    """Physical VMEM bytes per batch row (lane-padded), incl. double buffers + intermediates."""
    lane = lambda d: _round_up(d, _LANE)
    x_io = 2 * lane(d_in) * 4                 # double-buffered f32 x tile
    out_io = 2 * lane(d_out) * 4              # double-buffered f32 out tile
    interm = lane(d_in) * 2 + lane(hidden) * (4 + 2) + lane(d_out) * 4  # x_bf16, u1, s1, u2
    return x_io + out_io + interm


def _choose_tiling(batch, max_batch_tile, per_row_vmem):
    """Pick (tile_rows, n_tiles, padded_batch) under the VMEM budget."""
    batch = max(batch, 1)
    vmem_cap = max(_SUBLANE, (_VMEM_TILE_BUDGET // per_row_vmem) // _SUBLANE * _SUBLANE)
    tb_cap = max(_SUBLANE, min(max_batch_tile, vmem_cap))
    n_tiles = _cdiv(batch, tb_cap)
    # Keep >=2 grid steps for large batches so v7x megacore can shard the "parallel"
    # batch axis across both TensorCores and DMAs keep pipelining.
    if n_tiles == 1 and batch >= 2 * _MEGACORE_SPLIT_ROWS:
        n_tiles = 2
    tb = _round_up(_cdiv(batch, n_tiles), _SUBLANE)
    b_pad = n_tiles * tb
    return tb, n_tiles, b_pad


def _snn_controller_kernel(x_ref, w1_ref, thr1_ref, w2_ref, thr2_ref, out_ref):
    """Fused fc1 -> LIF -> fc2 -> LIF on one natural-layout batch tile.

    x_ref   : (TB, D_in)  f32    w1_ref : (H, D_in)  bf16   thr1_ref: (1, H)    f32
    w2_ref  : (D_out, H)  bf16   thr2_ref: (1, D_out) f32   out_ref : (TB, D_out) f32
    Biases are pre-folded into the thresholds: spike = (W @ x >= threshold - b).
    """
    # In-kernel bf16 cast of the loaded tile (no separate XLA pass over x in HBM).
    x = x_ref[...].astype(jnp.bfloat16)

    # fc1: (TB, D_in) x (H, D_in) -> (TB, H), f32 accumulation on the MXU.
    u1 = lax.dot_general(x, w1_ref[...],
                         dimension_numbers=(((1,), (1,)), ((), ())),
                         preferred_element_type=jnp.float32)
    # lif1: single-step spike; {0,1} is exact in bf16, halves the s1 footprint.
    s1 = (u1 >= thr1_ref[...]).astype(jnp.bfloat16)

    # fc2: (TB, H) x (D_out, H) -> (TB, D_out), bf16 x bf16 -> f32 on the MXU.
    u2 = lax.dot_general(s1, w2_ref[...],
                         dimension_numbers=(((1,), (1,)), ((), ())),
                         preferred_element_type=jnp.float32)
    # lif2: single-step spike, stored directly in the natural (TB, D_out) layout.
    out_ref[...] = (u2 >= thr2_ref[...]).astype(out_ref.dtype)


def snn_controller_forward(x, w1, b1, w2, b2, *, max_batch_tile=_DEFAULT_MAX_BATCH_TILE):
    """x: (B, input_dim) f32 -> (B, output_dim) f32 spikes.

    Weights use the PyTorch nn.Linear layout: w1 (hidden, input), b1 (hidden,),
    w2 (output, hidden), b2 (output,).
    """
    batch, input_dim = x.shape
    hidden_dim = w1.shape[0]
    output_dim = w2.shape[0]

    per_row = _vmem_bytes_per_batch_row(input_dim, hidden_dim, output_dim)
    tb, n_tiles, b_pad = _choose_tiling(batch, max_batch_tile, per_row)

    # Pad the batch only when needed (identity / removed by XLA for aligned batches).
    x_p = x if b_pad == batch else jnp.pad(x, ((0, b_pad - batch), (0, 0)))

    # Weights in bf16 (lossless for {0,1} spike inputs on fc2); biases folded into thresholds.
    w1_bf = w1.astype(jnp.bfloat16)
    w2_bf = w2.astype(jnp.bfloat16)
    thr1 = (LIF_THRESHOLD - b1).reshape(1, hidden_dim).astype(jnp.float32)
    thr2 = (LIF_THRESHOLD - b2).reshape(1, output_dim).astype(jnp.float32)

    # Scoped-VMEM limit: explicit so v5e's 16 MiB default never binds; stays below v7x physical.
    vmem_est = per_row * tb
    vmem_limit = int(min(max(_round_up(vmem_est * 5 // 4, 1 << 20), 16 << 20), _VMEM_LIMIT_CAP))

    cost = pl.CostEstimate(
        flops=2 * batch * (input_dim * hidden_dim + hidden_dim * output_dim),
        transcendentals=0,
        bytes_accessed=(x_p.size * 4 + w1_bf.size * 2 + w2_bf.size * 2
                        + (thr1.size + thr2.size) * 4 + b_pad * output_dim * 4),
    )

    out = pl.pallas_call(
        _snn_controller_kernel,
        out_shape=jax.ShapeDtypeStruct((b_pad, output_dim), jnp.float32),
        grid_spec=pltpu.PrefetchScalarGridSpec(
            num_scalar_prefetch=0,
            grid=(n_tiles,),
            in_specs=[
                # x tile marches along the batch axis in its natural layout.
                pl.BlockSpec((tb, input_dim), lambda i: (i, 0)),
                # Weights / thresholds: constant index_map -> VMEM-resident across steps.
                pl.BlockSpec((hidden_dim, input_dim), lambda i: (0, 0)),
                pl.BlockSpec((1, hidden_dim), lambda i: (0, 0)),
                pl.BlockSpec((output_dim, hidden_dim), lambda i: (0, 0)),
                pl.BlockSpec((1, output_dim), lambda i: (0, 0)),
            ],
            out_specs=pl.BlockSpec((tb, output_dim), lambda i: (i, 0)),
        ),
        compiler_params=pltpu.CompilerParams(
            dimension_semantics=("parallel",),   # megacore-shard batch on v7x
            vmem_limit_bytes=vmem_limit,
        ),
        cost_estimate=cost,
    )(x_p, w1_bf, thr1, w2_bf, thr2)

    # Natural (B, output_dim) layout already; only a slice if the batch was padded.
    return out if b_pad == batch else out[:batch]


def init_params(key, input_dim=24, hidden_dim=32, output_dim=4):
    """Deterministic init mirroring nn.Linear's U(-1/sqrt(fan_in), 1/sqrt(fan_in)).

    Stored in PyTorch layout: w (out_features, in_features), b (out_features,).
    """
    k1, k2, k3, k4 = jax.random.split(key, 4)
    bound1 = 1.0 / jnp.sqrt(jnp.float32(input_dim))
    bound2 = 1.0 / jnp.sqrt(jnp.float32(hidden_dim))
    w1 = jax.random.uniform(k1, (hidden_dim, input_dim), jnp.float32, -bound1, bound1)
    b1 = jax.random.uniform(k2, (hidden_dim,), jnp.float32, -bound1, bound1)
    w2 = jax.random.uniform(k3, (output_dim, hidden_dim), jnp.float32, -bound2, bound2)
    b2 = jax.random.uniform(k4, (output_dim,), jnp.float32, -bound2, bound2)
    return w1, b1, w2, b2


def _reference(x, w1, b1, w2, b2):
    """Pure-JAX reference mirroring the kernel's dtype handling and folded thresholds."""
    u1 = lax.dot_general(x.astype(jnp.bfloat16), w1.astype(jnp.bfloat16),
                         dimension_numbers=(((1,), (1,)), ((), ())),
                         preferred_element_type=jnp.float32)
    s1 = (u1 >= (LIF_THRESHOLD - b1)[None, :]).astype(jnp.bfloat16)
    u2 = lax.dot_general(s1, w2.astype(jnp.bfloat16),
                         dimension_numbers=(((1,), (1,)), ((), ())),
                         preferred_element_type=jnp.float32)
    return (u2 >= (LIF_THRESHOLD - b2)[None, :]).astype(jnp.float32)


if __name__ == "__main__":
    key = jax.random.PRNGKey(0)
    k_params, k_x1, k_x2, k_x3 = jax.random.split(key, 4)

    batch, input_dim, hidden_dim, output_dim = 2, 24, 32, 4
    w1, b1, w2, b2 = init_params(k_params, input_dim, hidden_dim, output_dim)

    # Small-batch case (exercises padding B=2 -> one 8-row tile).
    x = jax.random.normal(k_x1, (batch, input_dim), jnp.float32)
    out = snn_controller_forward(x, w1, b1, w2, b2)
    jax.block_until_ready(out)
    assert out.shape == (batch, output_dim)
    assert jnp.allclose(out, _reference(x, w1, b1, w2, b2)), \
        "kernel output mismatch vs JAX reference (small batch)"

    # Multi-tile case (exercises the batch grid + VMEM-resident weights).
    x_big = jax.random.normal(k_x2, (192, input_dim), jnp.float32)
    out_big = snn_controller_forward(x_big, w1, b1, w2, b2, max_batch_tile=64)
    jax.block_until_ready(out_big)
    assert out_big.shape == (192, output_dim)
    assert jnp.allclose(out_big, _reference(x_big, w1, b1, w2, b2)), \
        "kernel output mismatch vs JAX reference (multi-tile batch)"

    # Ragged case (batch not a multiple of the tile -> padded rows sliced away).
    x_rag = jax.random.normal(k_x3, (100, input_dim), jnp.float32)
    out_rag = snn_controller_forward(x_rag, w1, b1, w2, b2, max_batch_tile=64)
    jax.block_until_ready(out_rag)
    assert out_rag.shape == (100, output_dim)
    assert jnp.allclose(out_rag, _reference(x_rag, w1, b1, w2, b2)), \
        "kernel output mismatch vs JAX reference (ragged batch)"

    print("KERNEL_OK")
</pallas_src>

<mosaic_0001>
module attributes {stable_mosaic.version = 11 : i64} {
  func.func @_snn_controller_kernel(%arg0: i32, %arg1: memref<8x24xf32, #tpu.memory_space<vmem>>, %arg2: memref<32x24xbf16, #tpu.memory_space<vmem>>, %arg3: memref<1x32xf32, #tpu.memory_space<vmem>>, %arg4: memref<4x32xbf16, #tpu.memory_space<vmem>>, %arg5: memref<1x4xf32, #tpu.memory_space<vmem>>, %arg6: memref<8x4xf32, #tpu.memory_space<vmem>>) attributes {dimension_semantics = [#tpu.dimension_semantics<parallel>], iteration_bounds = array<i64: 1>, scalar_prefetch = 0 : i64, scratch_operands = 0 : i64, tpu.core_type = #tpu.core_type<tc>, window_params = [{transform_indices = @transform_0, window_bounds = array<i64: 8, 24>}, {pipeline_mode = #tpu.pipeline_mode<synchronous>, transform_indices = @transform_1, window_bounds = array<i64: 32, 24>}, {pipeline_mode = #tpu.pipeline_mode<synchronous>, transform_indices = @transform_2, window_bounds = array<i64: 1, 32>}, {pipeline_mode = #tpu.pipeline_mode<synchronous>, transform_indices = @transform_3, window_bounds = array<i64: 4, 32>}, {pipeline_mode = #tpu.pipeline_mode<synchronous>, transform_indices = @transform_4, window_bounds = array<i64: 1, 4>}, {transform_indices = @transform_5, window_bounds = array<i64: 8, 4>}]} {
    %c0 = arith.constant 0 : index
    %c0_0 = arith.constant 0 : index
    %0 = vector.load %arg1[%c0, %c0_0] : memref<8x24xf32, #tpu.memory_space<vmem>>, vector<8x24xf32>
    %1 = arith.truncf %0 : vector<8x24xf32> to vector<8x24xbf16>
    %c0_1 = arith.constant 0 : index
    %c0_2 = arith.constant 0 : index
    %2 = vector.load %arg2[%c0_1, %c0_2] : memref<32x24xbf16, #tpu.memory_space<vmem>>, vector<32x24xbf16>
    %cst = arith.constant dense<0.000000e+00> : vector<8x32xf32>
    %3 = tpu.matmul %1, %2, %cst {dimension_numbers = #tpu.dot_dimension_numbers<[1], [1], [0], [0], [0, 0, 1, 0], [], []>} : vector<8x24xbf16>, vector<32x24xbf16>, vector<8x32xf32> -> vector<8x32xf32>
    %c0_3 = arith.constant 0 : index
    %c0_4 = arith.constant 0 : index
    %4 = vector.load %arg3[%c0_3, %c0_4] : memref<1x32xf32, #tpu.memory_space<vmem>>, vector<1x32xf32>
    %5 = vector.broadcast %4 : vector<1x32xf32> to vector<8x32xf32>
    %6 = arith.cmpf oge, %3, %5 : vector<8x32xf32>
    %7 = arith.extui %6 : vector<8x32xi1> to vector<8x32xi32>
    %8 = arith.sitofp %7 : vector<8x32xi32> to vector<8x32xf32>
    %9 = arith.truncf %8 : vector<8x32xf32> to vector<8x32xbf16>
    %c0_5 = arith.constant 0 : index
    %c0_6 = arith.constant 0 : index
    %10 = vector.load %arg4[%c0_5, %c0_6] : memref<4x32xbf16, #tpu.memory_space<vmem>>, vector<4x32xbf16>
    %cst_7 = arith.constant dense<0.000000e+00> : vector<8x4xf32>
    %11 = tpu.matmul %9, %10, %cst_7 {dimension_numbers = #tpu.dot_dimension_numbers<[1], [1], [0], [0], [0, 0, 1, 0], [], []>} : vector<8x32xbf16>, vector<4x32xbf16>, vector<8x4xf32> -> vector<8x4xf32>
    %c0_8 = arith.constant 0 : index
    %c0_9 = arith.constant 0 : index
    %12 = vector.load %arg5[%c0_8, %c0_9] : memref<1x4xf32, #tpu.memory_space<vmem>>, vector<1x4xf32>
    %13 = vector.broadcast %12 : vector<1x4xf32> to vector<8x4xf32>
    %14 = arith.cmpf oge, %11, %13 : vector<8x4xf32>
    %15 = arith.extui %14 : vector<8x4xi1> to vector<8x4xi32>
    %16 = arith.sitofp %15 : vector<8x4xi32> to vector<8x4xf32>
    %c0_10 = arith.constant 0 : index
    %c0_11 = arith.constant 0 : index
    %17 = vector.load %arg6[%c0_10, %c0_11] : memref<8x4xf32, #tpu.memory_space<vmem>>, vector<8x4xf32>
    tpu.vector_store %arg6[%c0_10, %c0_11], %16 {strides = array<i32>} : memref<8x4xf32, #tpu.memory_space<vmem>>, vector<8x4xf32>,
    return
  }
  func.func @transform_0(%arg0: i32) -> (i32, i32) {
    %c0_i32 = arith.constant 0 : i32
    %c0_i32_0 = arith.constant 0 : i32
    return %arg0, %c0_i32 : i32, i32
  }
  func.func @transform_1(%arg0: i32) -> (i32, i32) {
    %c0_i32 = arith.constant 0 : i32
    %c0_i32_0 = arith.constant 0 : i32
    %c0_i32_1 = arith.constant 0 : i32
    return %c0_i32, %c0_i32_0 : i32, i32
  }
  func.func @transform_2(%arg0: i32) -> (i32, i32) {
    %c0_i32 = arith.constant 0 : i32
    %c0_i32_0 = arith.constant 0 : i32
    %c0_i32_1 = arith.constant 0 : i32
    return %c0_i32, %c0_i32_0 : i32, i32
  }
  func.func @transform_3(%arg0: i32) -> (i32, i32) {
    %c0_i32 = arith.constant 0 : i32
    %c0_i32_0 = arith.constant 0 : i32
    %c0_i32_1 = arith.constant 0 : i32
    return %c0_i32, %c0_i32_0 : i32, i32
  }
  func.func @transform_4(%arg0: i32) -> (i32, i32) {
    %c0_i32 = arith.constant 0 : i32
    %c0_i32_0 = arith.constant 0 : i32
    %c0_i32_1 = arith.constant 0 : i32
    return %c0_i32, %c0_i32_0 : i32, i32
  }
  func.func @transform_5(%arg0: i32) -> (i32, i32) {
    %c0_i32 = arith.constant 0 : i32
    %c0_i32_0 = arith.constant 0 : i32
    return %arg0, %c0_i32 : i32, i32
  }
}

</mosaic_0001>

<llo_original>
// kernel: tpu_custom_call.1
$region0: #{tpu_custom_call.1}
  #allocation0 [shape = 'u32[]', space=smem, size = 0x4, offset = 0x4, fixed_abs, tag = 'smem constant byte address 0x4 - core index']
  #allocation1 [shape = 'u32[72,128]{1,0:T(1,128)}', space=vmem, size = 0x9000, scoped, tag = 'internal scratch']
  %s0 = inlined_call_operand.vmem [shape: f32[8,24], index: 0, kind: input, shape index: {}]
  %s1 = inlined_call_operand.vmem [shape: bf16[32,24], index: 1, kind: input, shape index: {}]
  %s2 = inlined_call_operand.vmem [shape: f32[1,32], index: 2, kind: input, shape index: {}]
  %s3 = inlined_call_operand.vmem [shape: bf16[4,32], index: 3, kind: input, shape index: {}]
  %s4 = inlined_call_operand.vmem [shape: f32[1,4], index: 4, kind: input, shape index: {}]
  %s5 = inlined_call_operand.vmem [shape: f32[8,4], index: 5, kind: output, shape index: {}]
  %s6 = sld [smem:[#allocation0]]
  $region30: #{tpu_custom_call.1} parent=0
    _
  %s8 = ssub.s32 1, %s6
  %s9 = scalar_select 0, %s8, %s6
  // Predicated region
  $region2: #{tpu_custom_call.1} parent=0 // pred_check
    _
  $region3: #{tpu_custom_call.1} parent=0 // pred_check_branch
    %11 = sbr.rel (0) target = $region5
  $region4: #{tpu_custom_call.1} parent=0 // pred_region
    _
  $region5: #{tpu_custom_call.1} parent=0 // pred_fallthru
    _
  // Predicated region
  $region6: #{tpu_custom_call.1} parent=0 // pred_check
    _
  $region7: #{tpu_custom_call.1} parent=0 // pred_check_branch
    %13 = sbr.rel (0) target = $region9
  $region8: #{tpu_custom_call.1} parent=0 // pred_region
    _
  $region9: #{tpu_custom_call.1} parent=0 // pred_fallthru
    _
  // Predicated region
  $region10: #{tpu_custom_call.1} parent=0 // pred_check
    _
  $region11: #{tpu_custom_call.1} parent=0 // pred_check_branch
    %15 = sbr.rel (0) target = $region13
  $region12: #{tpu_custom_call.1} parent=0 // pred_region
    _
  $region13: #{tpu_custom_call.1} parent=0 // pred_fallthru
    _
  // Predicated region
  $region14: #{tpu_custom_call.1} parent=0 // pred_check
    _
  $region15: #{tpu_custom_call.1} parent=0 // pred_check_branch
    %17 = sbr.rel (0) target = $region17
  $region16: #{tpu_custom_call.1} parent=0 // pred_region
    _
  $region17: #{tpu_custom_call.1} parent=0 // pred_fallthru
    _
  // Predicated region
  $region18: #{tpu_custom_call.1} parent=0 // pred_check
    _
  $region19: #{tpu_custom_call.1} parent=0 // pred_check_branch
    %19 = sbr.rel (0) target = $region21
  $region20: #{tpu_custom_call.1} parent=0 // pred_region
    _
  $region21: #{tpu_custom_call.1} parent=0 // pred_fallthru
    _
  %v21 = vld [vmem:[%s0] sm:$0xff]
  %v22 = vpack.c.bf16 %v21, %v21
  %v23 = vld [vmem:[%s1] sm:$0xf]
  %v24 = vld [vmem:[%s1 + $0x4] sm:$0xf]
  %v25 = vld [vmem:[%s1 + $0x8] sm:$0xf]
  %v26 = vld [vmem:[%s1 + $0xc] sm:$0xf]
  %v31 = vunpack.c.l.b16 %v23
  %v32 = vunpack.c.l.b16 %v24
  %v33 = vunpack.c.l.b16 %v25
  %v34 = vunpack.c.l.b16 %v26
  %v35 = vpack.c.b16 %v32, %v31
  %v36 = vpack.c.b16 %v34, %v33
  %vm37 = vcmask 195584
  %v39 = vsel %vm37, %v22, 0
  %v42 = vsel %vm37, %v35, 0
  %v45 = vsel %vm37, %v36, 0
  %47 = vmatpush.bf16.xpose.msra.mxu0 0
  %48 = vmatpush.bf16.xpose.msra.mxu0 0
  %49 = vmatpush.bf16.xpose.msra.mxu0 0
  %50 = vmatpush.bf16.xpose.msra.mxu0 0
  %51 = vmatpush.bf16.xpose.msra.mxu0 0
  %52 = vmatpush.bf16.xpose.msra.mxu0 0
  %53 = vmatpush.bf16.xpose.msra.mxu0 %v45
  %54 = vmatpush.bf16.xpose.msra.mxu0 %v42
  %55 = vmatmul.bf16.gmra.mxu0 %v39
  %v56 = vpop.f32.mrf.mxu0
  %v57 = vadd.f32 0.0, %v56
  %v58 = vpop.f32.mrf.mxu0
  %59 = vdwg.mxu0
  %v60 = vld [vmem:[%s2] sm:$0x1]
  %v62 = vperm.slane %v60, 0
  %vm64 = vcmp.ge.f32.partialorder %v57, %v62
  %v65 = vsel %vm64, 1, 0
  %v66 = vcvt.s32.f32 %v65
  %v67 = vpack.c.bf16 %v66, %v66
  %v68 = vld [vmem:[%s3] sm:$0x3]
  %vm69 = vcmask 261120
  %v71 = vsel %vm69, %v67, 0
  %v74 = vsel %vm69, %v68, 0
  %76 = vmatpush.bf16.xpose.msra.mxu0 0
  %77 = vmatpush.bf16.xpose.msra.mxu0 0
  %78 = vmatpush.bf16.xpose.msra.mxu0 0
  %79 = vmatpush.bf16.xpose.msra.mxu0 0
  %80 = vmatpush.bf16.xpose.msra.mxu0 0
  %81 = vmatpush.bf16.xpose.msra.mxu0 0
  %82 = vmatpush.bf16.xpose.msra.mxu0 0
  %83 = vmatpush.bf16.xpose.msra.mxu0 %v74
  %84 = vmatmul.bf16.gmra.mxu0 %v71
  %v85 = vpop.f32.mrf.mxu0
  %v86 = vadd.f32 0.0, %v85
  %v87 = vpop.f32.mrf.mxu0
  %88 = vdwg.mxu0
  %v89 = vld [vmem:[%s4] sm:$0x1]
  %v91 = vperm.slane %v89, 0
  %vm93 = vcmp.ge.f32.partialorder %v86, %v91
  %v94 = vsel %vm93, 1, 0
  %v95 = vcvt.s32.f32 %v94
  %vm96 = vcmask 31744
  %97 = vst.msk [vmem:[%s5] sm:$0xff] %vm96, %v95
  // Predicated region
  $region22: #{tpu_custom_call.1} parent=0 // pred_check
    _
  $region23: #{tpu_custom_call.1} parent=0 // pred_check_branch
    %99 = sbr.rel (0) target = $region25
  $region24: #{tpu_custom_call.1} parent=0 // pred_region
    _
  $region25: #{tpu_custom_call.1} parent=0 // pred_fallthru
    _
  // Predicated region
  $region26: #{tpu_custom_call.1} parent=0 // pred_check
    _
  $region27: #{tpu_custom_call.1} parent=0 // pred_check_branch
    %101 = sbr.rel (0) target = $region29
  $region28: #{tpu_custom_call.1} parent=0 // pred_region
    _
  $region29: #{tpu_custom_call.1} parent=0 // pred_fallthru
    _

</llo_original>
